<compile_context>
chip_gen: v6e
topology: v6e:2x2x1
jax: 0.10.0
libtpu: 0.0.40
codegen_flags: <defaults>
</compile_context>

<pallas_src>
import jax
import jax.numpy as jnp
from jax.experimental import pallas as pl
from jax.experimental.pallas import tpu as pltpu


def _patch_applier_kernel(img_ref, adv_ref, out_ref):
    # img_ref/out_ref: (1, row_tile, lane); adv_ref: (1, 1, row_tile, lane)
    # Grid = (B, row_tiles, N); N is innermost and 'arbitrary', so out_ref's
    # block index is constant across N -> it stays resident in VMEM and is
    # written back to HBM only once per (batch, tile).
    @pl.when(pl.program_id(2) == 0)
    def _():
        out_ref[...] = img_ref[...]

    adv = adv_ref[:, 0]  # (1, row_tile, lane)
    out_ref[...] = jnp.where(adv == 0, out_ref[...], adv)


def _choose_tiling(flat_size, itemsize):
    """Pick a lane-dense (rows, lane) factorization and a row tile."""
    lane = next((c for c in (2048, 1024, 512, 256, 128) if flat_size % c == 0), 128)
    rows = pl.cdiv(flat_size, lane)
    # Target ~512 KiB per block: big enough to amortize per-grid-step overhead,
    # small enough to double-buffer well under the scoped-VMEM default on all
    # of v5e / v6e / v7x.
    target_rows = max(1, (512 * 1024) // (lane * itemsize))
    if rows <= target_rows:
        row_tile = rows
    else:
        row_tile = max(8, (target_rows // 8) * 8)
        rows = pl.cdiv(rows, row_tile) * row_tile  # pad so row_tile divides rows
    return lane, rows, row_tile


def patch_applier(img_batch, adv_batch):
    """img_batch: (B, C, H, W), adv_batch: (B, N, C, H, W) -> (B, C, H, W)."""
    B, C, H, W = img_batch.shape
    Bn, N, Cn, Hn, Wn = adv_batch.shape
    assert (B, C, H, W) == (Bn, Cn, Hn, Wn)
    assert img_batch.dtype == adv_batch.dtype

    if N == 0:
        return img_batch

    F = C * H * W
    itemsize = jnp.dtype(img_batch.dtype).itemsize
    lane, rows, row_tile = _choose_tiling(F, itemsize)
    Fp = rows * lane

    # Flatten CHW into a lane-dense trailing (rows, lane) layout. Pure reshapes
    # (no transposes). Any zero padding is a no-op under where(adv == 0, ...)
    # and is sliced off afterwards.
    img_flat = img_batch.reshape(B, F)
    adv_flat = adv_batch.reshape(B, N, F)
    if Fp != F:
        img_flat = jnp.pad(img_flat, ((0, 0), (0, Fp - F)))
        adv_flat = jnp.pad(adv_flat, ((0, 0), (0, 0), (0, Fp - F)))
    img3 = img_flat.reshape(B, rows, lane)
    adv4 = adv_flat.reshape(B, N, rows, lane)

    row_tiles = rows // row_tile
    block_bytes = row_tile * lane * itemsize
    # img (x2 buffers) + adv (x2) + resident out (+ writeback buffer) + slack.
    vmem_limit = int(min(64 * 1024 * 1024, max(32 * 1024 * 1024, 12 * block_bytes)))

    out3 = pl.pallas_call(
        _patch_applier_kernel,
        out_shape=jax.ShapeDtypeStruct((B, rows, lane), img_batch.dtype),
        grid_spec=pltpu.PrefetchScalarGridSpec(
            num_scalar_prefetch=0,
            grid=(B, row_tiles, N),  # N last: sequential accumulator axis
            in_specs=[
                pl.BlockSpec((1, row_tile, lane), lambda b, t, n: (b, t, 0)),
                pl.BlockSpec((1, 1, row_tile, lane), lambda b, t, n: (b, n, t, 0)),
            ],
            out_specs=pl.BlockSpec((1, row_tile, lane), lambda b, t, n: (b, t, 0)),
        ),
        compiler_params=pltpu.CompilerParams(
            dimension_semantics=("parallel", "parallel", "arbitrary"),
            vmem_limit_bytes=vmem_limit,
        ),
    )(img3, adv4)

    out = out3.reshape(B, Fp)
    if Fp != F:
        out = out[:, :F]
    return out.reshape(B, C, H, W)


def patch_applier_ref(img_batch, adv_batch):
    """Pure-JAX reference mirroring the PyTorch forward."""
    out = img_batch
    for n in range(adv_batch.shape[1]):
        adv = adv_batch[:, n]
        out = jnp.where(adv == 0, out, adv)
    return out


if __name__ == "__main__":
    key = jax.random.PRNGKey(0)
    k_img, k_adv, k_mask = jax.random.split(key, 3)

    B, N, C, H, W = 2, 3, 4, 16, 16

    img_batch = jax.random.uniform(k_img, (B, C, H, W), dtype=jnp.float32)

    # Adversarial patches: random values, zeroed outside a random mask so that
    # the `adv == 0` branch is exercised.
    adv_vals = jax.random.uniform(
        k_adv, (B, N, C, H, W), dtype=jnp.float32, minval=0.1, maxval=1.0
    )
    mask = (jax.random.uniform(k_mask, (B, N, 1, H, W)) > 0.5).astype(jnp.float32)
    adv_batch = adv_vals * mask  # zeros where mask == 0

    out = patch_applier(img_batch, adv_batch)
    jax.block_until_ready(out)

    expected = patch_applier_ref(img_batch, adv_batch)
    assert out.shape == img_batch.shape
    assert out.dtype == img_batch.dtype
    assert jnp.array_equal(out, expected), "Pallas output mismatch vs reference"

    print("KERNEL_OK")
</pallas_src>

<mosaic_0001>
module attributes {stable_mosaic.version = 11 : i64} {
  func.func @_patch_applier_kernel(%arg0: i32, %arg1: i32, %arg2: i32, %arg3: memref<1x1x1024xf32, #tpu.memory_space<vmem>>, %arg4: memref<1x1x1x1024xf32, #tpu.memory_space<vmem>>, %arg5: memref<1x1x1024xf32, #tpu.memory_space<vmem>>) attributes {dimension_semantics = [#tpu.dimension_semantics<parallel>, #tpu.dimension_semantics<parallel>, #tpu.dimension_semantics<arbitrary>], iteration_bounds = array<i64: 2, 1, 3>, scalar_prefetch = 0 : i64, scratch_operands = 0 : i64, tpu.core_type = #tpu.core_type<tc>, window_params = [{transform_indices = @transform_0, window_bounds = array<i64: 1, 1, 1024>}, {transform_indices = @transform_1, window_bounds = array<i64: 1, 1, 1, 1024>}, {transform_indices = @transform_2, window_bounds = array<i64: 1, 1, 1024>}]} {
    %c0_i32 = arith.constant 0 : i32
    %0 = arith.cmpi eq, %arg2, %c0_i32 : i32
    %1 = arith.extui %0 : i1 to i32
    %c0_i32_0 = arith.constant 0 : i32
    %2 = arith.cmpi ne, %1, %c0_i32_0 : i32
    scf.if %2 {
      %c0_10 = arith.constant 0 : index
      %c0_11 = arith.constant 0 : index
      %c0_12 = arith.constant 0 : index
      %10 = vector.load %arg3[%c0_10, %c0_11, %c0_12] : memref<1x1x1024xf32, #tpu.memory_space<vmem>>, vector<1x1x1024xf32>
      %c0_13 = arith.constant 0 : index
      %c0_14 = arith.constant 0 : index
      %c0_15 = arith.constant 0 : index
      %11 = vector.load %arg5[%c0_13, %c0_14, %c0_15] : memref<1x1x1024xf32, #tpu.memory_space<vmem>>, vector<1x1x1024xf32>
      tpu.vector_store %arg5[%c0_13, %c0_14, %c0_15], %10 {strides = array<i32>} : memref<1x1x1024xf32, #tpu.memory_space<vmem>>, vector<1x1x1024xf32>,
    } else {
    }
    %c0 = arith.constant 0 : index
    %c0_1 = arith.constant 0 : index
    %c0_2 = arith.constant 0 : index
    %c0_3 = arith.constant 0 : index
    %3 = vector.load %arg4[%c0, %c0_1, %c0_2, %c0_3] : memref<1x1x1x1024xf32, #tpu.memory_space<vmem>>, vector<1x1x1x1024xf32>
    %4 = vector.shape_cast %3 : vector<1x1x1x1024xf32> to vector<1x1x1024xf32>
    %cst = arith.constant 0.000000e+00 : f32
    %5 = vector.broadcast %cst : f32 to vector<1x1x1024xf32>
    %6 = arith.cmpf oeq, %4, %5 : vector<1x1x1024xf32>
    %c0_4 = arith.constant 0 : index
    %c0_5 = arith.constant 0 : index
    %c0_6 = arith.constant 0 : index
    %7 = vector.load %arg5[%c0_4, %c0_5, %c0_6] : memref<1x1x1024xf32, #tpu.memory_space<vmem>>, vector<1x1x1024xf32>
    %8 = arith.select %6, %7, %4 : vector<1x1x1024xi1>, vector<1x1x1024xf32>
    %c0_7 = arith.constant 0 : index
    %c0_8 = arith.constant 0 : index
    %c0_9 = arith.constant 0 : index
    %9 = vector.load %arg5[%c0_7, %c0_8, %c0_9] : memref<1x1x1024xf32, #tpu.memory_space<vmem>>, vector<1x1x1024xf32>
    tpu.vector_store %arg5[%c0_7, %c0_8, %c0_9], %8 {strides = array<i32>} : memref<1x1x1024xf32, #tpu.memory_space<vmem>>, vector<1x1x1024xf32>,
    return
  }
  func.func @transform_0(%arg0: i32, %arg1: i32, %arg2: i32) -> (i32, i32, i32) {
    %c0_i32 = arith.constant 0 : i32
    %c0_i32_0 = arith.constant 0 : i32
    return %arg0, %arg1, %c0_i32 : i32, i32, i32
  }
  func.func @transform_1(%arg0: i32, %arg1: i32, %arg2: i32) -> (i32, i32, i32, i32) {
    %c0_i32 = arith.constant 0 : i32
    %c0_i32_0 = arith.constant 0 : i32
    return %arg0, %arg2, %arg1, %c0_i32 : i32, i32, i32, i32
  }
  func.func @transform_2(%arg0: i32, %arg1: i32, %arg2: i32) -> (i32, i32, i32) {
    %c0_i32 = arith.constant 0 : i32
    %c0_i32_0 = arith.constant 0 : i32
    return %arg0, %arg1, %c0_i32 : i32, i32, i32
  }
}

</mosaic_0001>

<llo_original>
// kernel: tpu_custom_call.1
$region0: #{tpu_custom_call.1}
  #allocation0 [shape = 'u32[]', space=smem, size = 0x4, offset = 0x4, fixed_abs, tag = 'smem constant byte address 0x4 - core index']
  #allocation1 [shape = 'u32[144,128]{1,0:T(1,128)}', space=vmem, size = 0x12000, scoped, tag = 'internal scratch']
  %s0 = inlined_call_operand.hbm [shape: f32[2,1,1024], index: 0, kind: input, shape index: {}]
  %s1 = inlined_call_operand.hbm [shape: f32[2,3,1,1024], index: 1, kind: input, shape index: {}]
  %s2 = inlined_call_operand.hbm [shape: f32[2,1,1024], index: 2, kind: output, shape index: {}]
  %s3 = sld [smem:[#allocation0]]
  $region53: #{tpu_custom_call.1} parent=0
    _
  %s5 = ssub.s32 1, %s3
  %s6 = scalar_select 0, %s5, %s3
  $region1: #{tpu_custom_call.1} parent=0
    #allocation2 [shape = 'u8[8192]{0}', space=vmem, size = 0x2000, scoped, tag = 'input window, operand 0']
    #allocation3 [shape = 's32[2]{0}', space=sflag, size = 0x8, scoped, tag = 'scoped memory for tpu_custom_call.1']
    #allocation4 [shape = 's32[2]{0}', space=sflag, size = 0x8, scoped, tag = 'scoped memory for tpu_custom_call.1']
    #allocation5 [shape = 'u8[8192]{0}', space=vmem, size = 0x2000, scoped, tag = 'input window, operand 1']
    #allocation6 [shape = 's32[2]{0}', space=sflag, size = 0x8, scoped, tag = 'scoped memory for tpu_custom_call.1']
    #allocation7 [shape = 'u8[8192]{0}', space=vmem, size = 0x2000, scoped, tag = 'output window, operand 0']
    %7 = vsyncpa [#allocation3], 0
    %s8 = scalar_lea.sflag [#allocation3], 1
    %9 = vsyncpa %s8, 0
    %10 = vsyncpa [#allocation6], 0
    %s11 = scalar_lea.sflag [#allocation6], 1
    %12 = vsyncpa %s11, 0
    %13 = vsyncpa [#allocation4], 0
    %s14 = scalar_lea.sflag [#allocation4], 1
    %15 = vsyncpa %s14, 0
    loop: start=0, step=1, limit=8
    $region2: #{tpu_custom_call.1} parent=1 // loop_pre_header
      _
    $region3: #{tpu_custom_call.1} parent=1 // loop_header
      %s17 = sphi 0, %s21
      %p18 = scmp.ge.s32.totalorder %s17, 8
      %s24 = sphi 0, %s43
      %s25 = sphi 0, %s39
      %s26 = sphi 0, %s35
      %s27 = sphi 0, %s24
      %s28 = sphi 0, %s25
      %s29 = sphi 0, %s26
      %s30 = sphi 0, %s27
      %s31 = sphi 0, %s28
      %s32 = sphi 0, %s29
      %s48 = sphi 0, %s50
      %s51 = sphi 0, %s48
      %s52 = sphi 0, %s51
      %s68 = sphi 0, %s52
      %s78 = sphi 0, %s80
      %s81 = sphi 0, %s78
      %s82 = sphi 0, %s81
      %s98 = sphi 0, %s82
      %s106 = sphi 0, %s108
      %s109 = sphi 0, %s106
      %s110 = sphi 0, %s109
      %s126 = sphi 0, %s110
    $region4: #{tpu_custom_call.1} parent=1 // loop_header_branch
      %20 = sbr.rel (%p18) target = $region8
    $region5: #{tpu_custom_call.1} parent=1 // loop_body
      %s22 = ssub.s32 %s17, 1
      %s23 = ssub.s32 %s17, 2
      %s33 = sadd.s32 1, %s26
      %p34 = scmp.ge.s32.totalorder %s33, 3
      %s35 = scalar_select %p34, 0, %s33
      %s36 = sadd.s32 1, %s25
      %s37 = scalar_select %p34, %s36, %s25
      %p38 = scmp.ge.s32.totalorder %s37, 1
      %s39 = scalar_select %p38, 0, %s37
      %s40 = sadd.s32 1, %s24
      %s41 = scalar_select %p38, %s40, %s24
      %p42 = scmp.ge.s32.totalorder %s41, 2
      %s43 = scalar_select %p42, 0, %s41
      %s44 = ssub.s32 %s24, %s43
      %s45 = ssub.s32 %s25, %s39
      %s46 = sor.u32 %s44, %s45
      %p47 = scmp.eq.s32.totalorder %s46, 0
      %s49 = sadd.s32 %s48, 1
      %s50 = scalar_select %p47, %s48, %s49
      %p53 = pneg %p47
      %p54 = scmp.eq.s32.totalorder %s17, 5
      %p55 = por %p53, %p54
      %p56 = scmp.ne.s32.totalorder %s48, %s51
      %p57 = scmp.eq.s32.totalorder %s17, 0
      %p58 = por %p56, %p57
      %p59 = scmp.ne.s32.totalorder %s48, %s51
      %p60 = scmp.eq.s32.totalorder %s22, 5
      %p61 = por %p59, %p60
      %p62 = scmp.ne.s32.totalorder %s51, %s52
      %p63 = scmp.eq.s32.totalorder %s22, 0
      %p64 = por %p62, %p63
      %p65 = scmp.ne.s32.totalorder %s51, %s52
      %p66 = scmp.eq.s32.totalorder %s23, 5
      %p67 = por %p65, %p66
      %p69 = scmp.ne.s32.totalorder %s52, %s68
      %p70 = scmp.eq.s32.totalorder %s23, 0
      %p71 = por %p69, %p70
      %s72 = ssub.s32 %s24, %s43
      %s73 = ssub.s32 %s26, %s35
      %s74 = sor.u32 %s72, %s73
      %s75 = ssub.s32 %s25, %s39
      %s76 = sor.u32 %s74, %s75
      %p77 = scmp.eq.s32.totalorder %s76, 0
      %s79 = sadd.s32 %s78, 1
      %s80 = scalar_select %p77, %s78, %s79
      %p83 = pneg %p77
      %p84 = scmp.eq.s32.totalorder %s17, 5
      %p85 = por %p83, %p84
      %p86 = scmp.ne.s32.totalorder %s78, %s81
      %p87 = scmp.eq.s32.totalorder %s17, 0
      %p88 = por %p86, %p87
      %p89 = scmp.ne.s32.totalorder %s78, %s81
      %p90 = scmp.eq.s32.totalorder %s22, 5
      %p91 = por %p89, %p90
      %p92 = scmp.ne.s32.totalorder %s81, %s82
      %p93 = scmp.eq.s32.totalorder %s22, 0
      %p94 = por %p92, %p93
      %p95 = scmp.ne.s32.totalorder %s81, %s82
      %p96 = scmp.eq.s32.totalorder %s23, 5
      %p97 = por %p95, %p96
      %p99 = scmp.ne.s32.totalorder %s82, %s98
      %p100 = scmp.eq.s32.totalorder %s23, 0
      %p101 = por %p99, %p100
      %s102 = ssub.s32 %s24, %s43
      %s103 = ssub.s32 %s25, %s39
      %s104 = sor.u32 %s102, %s103
      %p105 = scmp.eq.s32.totalorder %s104, 0
      %s107 = sadd.s32 %s106, 1
      %s108 = scalar_select %p105, %s106, %s107
      %p111 = pneg %p105
      %p112 = scmp.eq.s32.totalorder %s17, 5
      %p113 = por %p111, %p112
      %p114 = scmp.ne.s32.totalorder %s106, %s109
      %p115 = scmp.eq.s32.totalorder %s17, 0
      %p116 = por %p114, %p115
      %p117 = scmp.ne.s32.totalorder %s106, %s109
      %p118 = scmp.eq.s32.totalorder %s22, 5
      %p119 = por %p117, %p118
      %p120 = scmp.ne.s32.totalorder %s109, %s110
      %p121 = scmp.eq.s32.totalorder %s22, 0
      %p122 = por %p120, %p121
      %p123 = scmp.ne.s32.totalorder %s109, %s110
      %p124 = scmp.eq.s32.totalorder %s23, 5
      %p125 = por %p123, %p124
      %p127 = scmp.ne.s32.totalorder %s110, %s126
      %p128 = scmp.eq.s32.totalorder %s23, 0
      %p129 = por %p127, %p128
      %p130 = scmp.le.s32.totalorder 1, %s17
      %p131 = scmp.lt.s32.totalorder %s17, 7
      %p132 = pnand %p130, %p131
      %p133 = pneg %p132
      // Predicated region
      $region9: #{tpu_custom_call.1} parent=5 // pred_check
        _
      $region10: #{tpu_custom_call.1} parent=5 // pred_check_branch
        %135 = sbr.rel (%p132) target = $region12
      $region11: #{tpu_custom_call.1} parent=5 // pred_region
        %s136 = ssub.s32 %s17, 1
      $region12: #{tpu_custom_call.1} parent=5 // pred_fallthru
        _
      %p137 = scmp.lt.s32.totalorder %s17, 6
      // Predicated region
      $region13: #{tpu_custom_call.1} parent=5 // pred_check
        %p138 = pneg %p137
      $region14: #{tpu_custom_call.1} parent=5 // pred_check_branch
        %140 = sbr.rel (%p138) target = $region16
      $region15: #{tpu_custom_call.1} parent=5 // pred_region
        // Predicated region
        $region17: #{tpu_custom_call.1} parent=15 // pred_check
          %p141 = pneg %p58
        $region18: #{tpu_custom_call.1} parent=15 // pred_check_branch
          %143 = sbr.rel (%p141) target = $region20
        $region19: #{tpu_custom_call.1} parent=15 // pred_region
          %s144 = sand.u32 %s48, 1
          %s145 = scalar_lea.sflag [#allocation3], %s144
          %s146 = sand.u32 %s48, 1
          %s147 = smul.addr %s146, 8
          %s148 = scalar_lea.vmem [#allocation2], %s147
          %s150 = ssub.s32 128, 128
          %151 = vsyncadd %s145, %s150
          %s152 = smul.addr %s25, 8
          %s153 = smul.addr %s24, 8
          %s154 = sadd.s32 %s152, %s153
          %s155 = smul.addr %s154, 16
          %s156 = scalar_lea.hbm %s0, %s155
          %s158 = sshll.u32 %s148, 4
          %s159 = int_to_ptr.vmem [resolvable:$true] %s158
          %161 = dma.hbm_to_vmem [thread:$0]  %s156, 128, %s159, %s145
        $region20: #{tpu_custom_call.1} parent=15 // pred_fallthru
          _
        // Predicated region
        $region21: #{tpu_custom_call.1} parent=15 // pred_check
          %p162 = pneg %p88
        $region22: #{tpu_custom_call.1} parent=15 // pred_check_branch
          %164 = sbr.rel (%p162) target = $region24
        $region23: #{tpu_custom_call.1} parent=15 // pred_region
          %s165 = sand.u32 %s78, 1
          %s166 = scalar_lea.sflag [#allocation6], %s165
          %s167 = sand.u32 %s78, 1
          %s168 = smul.addr %s167, 8
          %s169 = scalar_lea.vmem [#allocation5], %s168
          %s171 = ssub.s32 128, 128
          %172 = vsyncadd %s166, %s171
          %s173 = smul.addr %s25, 8
          %s174 = smul.addr %s26, 8
          %s175 = sadd.s32 %s173, %s174
          %s176 = smul.addr %s24, 24
          %s177 = sadd.s32 %s175, %s176
          %s178 = smul.addr %s177, 16
          %s179 = scalar_lea.hbm %s1, %s178
          %s181 = sshll.u32 %s169, 4
          %s182 = int_to_ptr.vmem [resolvable:$true] %s181
          %184 = dma.hbm_to_vmem [thread:$0]  %s179, 128, %s182, %s166
        $region24: #{tpu_custom_call.1} parent=15 // pred_fallthru
          _
      $region16: #{tpu_custom_call.1} parent=5 // pred_fallthru
        _
      %p185 = scmp.le.s32.totalorder 1, %s17
      %p186 = scmp.lt.s32.totalorder %s17, 7
      %p187 = pnand %p185, %p186
      %p188 = pneg %p187
      // Predicated region
      $region25: #{tpu_custom_call.1} parent=5 // pred_check
        _
      $region26: #{tpu_custom_call.1} parent=5 // pred_check_branch
        %190 = sbr.rel (%p187) target = $region28
      $region27: #{tpu_custom_call.1} parent=5 // pred_region
        %s191 = ssub.s32 %s17, 1
        %s192 = sand.u32 %s51, 1
        %s193 = scalar_lea.sflag [#allocation3], %s192
        %s194 = sand.u32 %s51, 1
        %s195 = smul.addr %s194, 8
        %s196 = scalar_lea.vmem [#allocation2], %s195
        // Predicated region
        $region29: #{tpu_custom_call.1} parent=27 // pred_check
          %p197 = pneg %p64
        $region30: #{tpu_custom_call.1} parent=27 // pred_check_branch
          %199 = sbr.rel (%p197) target = $region32
        $region31: #{tpu_custom_call.1} parent=27 // pred_region
          %200 = dma.done %s193, 128
        $region32: #{tpu_custom_call.1} parent=27 // pred_fallthru
          _
        %s201 = sand.u32 %s81, 1
        %s202 = scalar_lea.sflag [#allocation6], %s201
        %s203 = sand.u32 %s81, 1
        %s204 = smul.addr %s203, 8
        %s205 = scalar_lea.vmem [#allocation5], %s204
        // Predicated region
        $region33: #{tpu_custom_call.1} parent=27 // pred_check
          %p206 = pneg %p94
        $region34: #{tpu_custom_call.1} parent=27 // pred_check_branch
          %208 = sbr.rel (%p206) target = $region36
        $region35: #{tpu_custom_call.1} parent=27 // pred_region
          %209 = dma.done %s202, 128
        $region36: #{tpu_custom_call.1} parent=27 // pred_fallthru
          _
        %s210 = sand.u32 %s51, 1
        %s211 = scalar_lea.sflag [#allocation3], %s210
        %s212 = sand.u32 %s51, 1
        %s213 = smul.addr %s212, 8
        %s214 = scalar_lea.vmem [#allocation2], %s213
        %p215 = pneg %p64
        %p216 = pneg %p61
        %s217 = sand.u32 %s81, 1
        %s218 = scalar_lea.sflag [#allocation6], %s217
        %s219 = sand.u32 %s81, 1
        %s220 = smul.addr %s219, 8
        %s221 = scalar_lea.vmem [#allocation5], %s220
        %p222 = pneg %p94
        %p223 = pneg %p91
        %p224 = pneg %p122
        %p225 = pneg %p119
        %s226 = sand.u32 %s109, 1
        %s227 = scalar_lea.sflag [#allocation4], %s226
        %s228 = sand.u32 %s109, 1
        %s229 = smul.addr %s228, 8
        %s230 = scalar_lea.vmem [#allocation7], %s229
        %p231 = scmp.eq.s32.totalorder %s29, 0
        // Predicated region
        $region37: #{tpu_custom_call.1} parent=27 // pred_check
          %p232 = pneg %p231
        $region38: #{tpu_custom_call.1} parent=27 // pred_check_branch
          %234 = sbr.rel (%p232) target = $region40
        $region39: #{tpu_custom_call.1} parent=27 // pred_region
          %v235 = vld [vmem:[%s196] sm:$0xff]
          %236 = vst [vmem:[%s230] sm:$0xff] %v235
        $region40: #{tpu_custom_call.1} parent=27 // pred_fallthru
          _
        %v237 = vld [vmem:[%s205] sm:$0xff]
        %vm238 = vcmp.eq.f32.partialorder %v237, 0.0
        %v239 = vld [vmem:[%s230] sm:$0xff]
        %v240 = vsel %vm238, %v239, %v237
        %241 = vst [vmem:[%s230] sm:$0xff] %v240
        %s242 = sand.u32 %s109, 1
        %s243 = scalar_lea.sflag [#allocation4], %s242
        %s244 = sand.u32 %s109, 1
        %s245 = smul.addr %s244, 8
        %s246 = scalar_lea.vmem [#allocation7], %s245
        // Predicated region
        $region41: #{tpu_custom_call.1} parent=27 // pred_check
          %p247 = pneg %p119
        $region42: #{tpu_custom_call.1} parent=27 // pred_check_branch
          %249 = sbr.rel (%p247) target = $region44
        $region43: #{tpu_custom_call.1} parent=27 // pred_region
          %s251 = ssub.s32 128, 128
          %252 = vsyncadd %s243, %s251
          %s253 = smul.addr %s28, 8
          %s254 = smul.addr %s27, 8
          %s255 = sadd.s32 %s253, %s254
          %s256 = smul.addr %s255, 16
          %s257 = scalar_lea.hbm %s2, %s256
          %s259 = sshll.u32 %s246, 4
          %s260 = int_to_ptr.vmem [resolvable:$true] %s259
          %262 = dma.vmem_to_hbm [thread:$0]  %s260, 128, %s257, %s243
        $region44: #{tpu_custom_call.1} parent=27 // pred_fallthru
          _
      $region28: #{tpu_custom_call.1} parent=5 // pred_fallthru
        _
      %p263 = scmp.le.s32.totalorder 2, %s17
      // Predicated region
      $region45: #{tpu_custom_call.1} parent=5 // pred_check
        %p264 = pneg %p263
      $region46: #{tpu_custom_call.1} parent=5 // pred_check_branch
        %266 = sbr.rel (%p264) target = $region48
      $region47: #{tpu_custom_call.1} parent=5 // pred_region
        %s267 = ssub.s32 %s17, 2
        // Predicated region
        $region49: #{tpu_custom_call.1} parent=47 // pred_check
          %p268 = pneg %p125
        $region50: #{tpu_custom_call.1} parent=47 // pred_check_branch
          %270 = sbr.rel (%p268) target = $region52
        $region51: #{tpu_custom_call.1} parent=47 // pred_region
          %s271 = sand.u32 %s110, 1
          %s272 = scalar_lea.sflag [#allocation4], %s271
          %s273 = sand.u32 %s110, 1
          %s274 = smul.addr %s273, 8
          %s275 = scalar_lea.vmem [#allocation7], %s274
          %276 = dma.done %s272, 128
        $region52: #{tpu_custom_call.1} parent=47 // pred_fallthru
          _
      $region48: #{tpu_custom_call.1} parent=5 // pred_fallthru
        _
    $region6: #{tpu_custom_call.1} parent=1 // loop_footer
      %s21 = sadd.s32 1, %s17
    $region7: #{tpu_custom_call.1} parent=1 // loop_footer_branch
      %16 = sbr.rel target = $region3
    $region8: #{tpu_custom_call.1} parent=1 // loop_exit
      _
    %277 = vsyncpa [#allocation3], 1
    %s278 = scalar_lea.sflag [#allocation3], 1
    %279 = vsyncpa %s278, 1
    %280 = vsyncpa [#allocation6], 1
    %s281 = scalar_lea.sflag [#allocation6], 1
    %282 = vsyncpa %s281, 1
    %283 = vsyncpa [#allocation4], 1
    %s284 = scalar_lea.sflag [#allocation4], 1
    %285 = vsyncpa %s284, 1

</llo_original>
